<compile_context>
chip_gen: v5e
topology: v5e:2x2
jax: 0.10.0
libtpu: 0.0.40
codegen_flags: <defaults>
</compile_context>

<pallas_src>
import jax
import jax.numpy as jnp
from jax.experimental import pallas as pl
from jax.experimental.pallas import tpu as pltpu


def _round_up(x, m):
    return ((x + m - 1) // m) * m


def _cdiv(a, b):
    return -(-a // b)


def expert_mlp_kernel(x_ref, w1_ref, b1_ref, w2_ref, b2_ref, o_ref, acc_ref):
    """One (batch-tile, hidden-tile) grid step.

    x_ref:  (TB, Dp)   w1_ref: (Dp, TH)   b1_ref: (1, TH)
    w2_ref: (TH, Dp)   b2_ref: (1, Dp)    o_ref:  (TB, Dp)
    acc_ref: (TB, Dp) f32 scratch accumulating partial second-matmul results
    over the hidden (reduction) grid axis.
    """
    h_idx = pl.program_id(1)

    @pl.when(h_idx == 0)
    def _init():
        acc_ref[...] = jnp.zeros_like(acc_ref)

    x = x_ref[...]
    # First linear (MXU, f32 accumulate) + bias + ReLU in f32.
    hidden = jnp.dot(x, w1_ref[...], preferred_element_type=jnp.float32)
    hidden = jnp.maximum(hidden + b1_ref[...], 0.0)

    # Dropout(p=0.1): identity in eval mode.
    # TODO(synk): training-mode dropout via pltpu.prng_seed/prng_random_bits.

    # Partial second linear for this hidden tile; accumulate in f32.
    acc_ref[...] += jnp.dot(hidden.astype(x.dtype), w2_ref[...],
                            preferred_element_type=jnp.float32)

    @pl.when(h_idx == pl.num_programs(1) - 1)
    def _finalize():
        o_ref[...] = (acc_ref[...] + b2_ref[...]).astype(o_ref.dtype)


def _vmem_bytes(tb, th, dp, n_h, in_item, out_item):
    w_bufs = 1 if n_h == 1 else 2            # constant-index weights: single buffer
    weights = w_bufs * 2 * dp * th * in_item  # w1 tile + w2 tile
    biases = w_bufs * th * 4 + dp * 4         # b1 tile(s) + b2 (single-buffered)
    acts = 2 * tb * dp * (in_item + out_item)  # x / out double-buffered
    acc = tb * dp * 4                          # f32 accumulator scratch
    inter = tb * th * (4 + in_item)            # f32 hidden + compute-dtype copy
    return weights + biases + acts + acc + inter


def _vmem_budget_bytes():
    cap = 64 * 1024 * 1024  # conservative default: v7x per-TensorCore VMEM
    try:
        info = pltpu.get_tpu_info()
        c = getattr(info, "vmem_capacity_bytes", None)
        if c:
            cap = int(c)
    except Exception:
        pass
    # Leave headroom for compiler-internal scratch / semaphores: never request
    # the entire physical VMEM (~54 MiB on v7x, ~108 MiB on v5e/v6e).
    return int(0.85 * cap)


def _choose_tiles(dp, hp0, block_b, block_h, in_item, out_item, budget):
    """Pick (batch tile, hidden tile) so the 1.25x-padded footprint fits VMEM."""
    tb_candidates = []
    tb = max(8, _round_up(block_b, 8))
    while True:
        tb_candidates.append(tb)
        if tb <= 8:
            break
        tb = max(8, _round_up(tb // 2, 8))

    if block_h is not None:
        th_candidates = [min(_round_up(block_h, 128), hp0)]
    else:
        th_candidates = []
        th = hp0
        while True:
            th_candidates.append(th)
            if th <= 128:
                break
            th = max(128, _round_up(th // 2, 128))

    for tb in tb_candidates:          # prefer the largest batch tile ...
        for th in th_candidates:      # ... then the largest hidden tile that fits
            n_h = _cdiv(hp0, th)
            if int(1.25 * _vmem_bytes(tb, th, dp, n_h, in_item, out_item)) <= budget:
                return tb, th
    return tb_candidates[-1], th_candidates[-1]  # smallest tiles: best effort


def make_expert_mlp(w1, b1, w2, b2, *, compute_dtype=None, block_b=512,
                    block_h=None, min_pallas_dim=256, force_pallas=False):
    """Prepare an ExpertMLP forward fn.  Weights are padded/cast ONCE here.

    w1: (D, H), b1: (H,)   (stored transposed vs PyTorch so y = x @ W + b)
    w2: (H, D), b2: (D,)
    Returns fn(x: (B, D)) -> (B, D) in x.dtype.
    """
    D, H = w1.shape
    assert w2.shape == (H, D) and b1.shape == (H,) and b2.shape == (D,)
    if compute_dtype is None:
        compute_dtype = w1.dtype
    compute_dtype = jnp.dtype(compute_dtype)

    # Shape gate: tiny experts (padded up to 128 lanes) waste most of the MXU
    # and the padding traffic dominates -> plain XLA fusion wins there.
    if not force_pallas and max(D, H) < min_pallas_dim:
        def xla_fn(x):
            hid = jnp.maximum(x @ w1.astype(x.dtype) + b1.astype(x.dtype), 0)
            return (hid @ w2.astype(x.dtype) + b2.astype(x.dtype)).astype(x.dtype)
        return xla_fn

    in_item = compute_dtype.itemsize
    Dp = _round_up(D, 128)
    Hp0 = _round_up(H, 128)
    budget = _vmem_budget_bytes()
    tb_sel, TH = _choose_tiles(Dp, Hp0, block_b, block_h, in_item, in_item, budget)
    Hp = _round_up(Hp0, TH)
    n_h = Hp // TH

    # ---- pad + cast weights/biases ONCE (hoisted out of the hot path). ----
    # Zero padding keeps the math exact: padded w1/b1 columns give relu(0)=0,
    # padded w2 rows/cols and b2 entries contribute 0 to the (sliced-away) output.
    if (Dp, Hp) == (D, H) and w1.dtype == compute_dtype:
        w1p = w1
    else:
        w1p = jnp.zeros((Dp, Hp), compute_dtype).at[:D, :H].set(w1.astype(compute_dtype))
    if (Hp, Dp) == (H, D) and w2.dtype == compute_dtype:
        w2p = w2
    else:
        w2p = jnp.zeros((Hp, Dp), compute_dtype).at[:H, :D].set(w2.astype(compute_dtype))
    b1p = jnp.zeros((1, Hp), jnp.float32).at[0, :H].set(b1.astype(jnp.float32))
    b2p = jnp.zeros((1, Dp), jnp.float32).at[0, :D].set(b2.astype(jnp.float32))

    # Constant-index blocks are single-buffered (double-buffering them is pure
    # VMEM waste); streamed hidden-tiles keep the default double-buffering.
    w_mode = pl.Buffered(1) if n_h == 1 else None

    def _spec(shape, imap, mode=None):
        if mode is None:
            return pl.BlockSpec(shape, imap)
        return pl.BlockSpec(shape, imap, pipeline_mode=mode)

    def fn(x):
        B, Dx = x.shape
        assert Dx == D, f"expected (..., {D}), got {x.shape}"
        out_dtype = x.dtype
        out_item = jnp.dtype(out_dtype).itemsize

        TB = min(tb_sel, max(8, _round_up(B, 8)))
        # v7x megacore: ensure >= 2 steps on the "parallel" batch axis so both
        # TensorCores get work (no-op on single-TC v5e/v6e).
        if B >= 16 and _round_up(B, TB) // TB < 2:
            TB = max(8, _round_up(_cdiv(B, 2), 8))
        Bp = _round_up(B, TB)
        n_b = Bp // TB

        if (Bp, Dp) == (B, D) and x.dtype == compute_dtype:
            xp = x  # aligned & right dtype: no padding copy at all
        else:
            xp = jnp.zeros((Bp, Dp), compute_dtype).at[:B, :D].set(
                x.astype(compute_dtype))

        vmem_limit = max(
            8 * 1024 * 1024,
            min(int(1.25 * _vmem_bytes(TB, TH, Dp, n_h, in_item, out_item)), budget))

        flops = 4 * Bp * Dp * Hp  # two matmuls, 2*M*N*K each
        weight_reads = n_b if n_h > 1 else 1
        bytes_accessed = (Bp * Dp * in_item
                          + weight_reads * (2 * Dp * Hp * in_item + Hp * 4)
                          + Dp * 4
                          + Bp * Dp * out_item)
        cost = pl.CostEstimate(flops=flops, transcendentals=0,
                               bytes_accessed=bytes_accessed)

        out = pl.pallas_call(
            expert_mlp_kernel,
            out_shape=jax.ShapeDtypeStruct((Bp, Dp), out_dtype),
            grid_spec=pltpu.PrefetchScalarGridSpec(
                num_scalar_prefetch=0,
                grid=(n_b, n_h),
                in_specs=[
                    _spec((TB, Dp), lambda i, h: (i, 0)),               # x tile
                    _spec((Dp, TH), lambda i, h: (0, h), w_mode),       # w1 hidden tile
                    _spec((1, TH), lambda i, h: (0, h), w_mode),        # b1 hidden tile
                    _spec((TH, Dp), lambda i, h: (h, 0), w_mode),       # w2 hidden tile
                    _spec((1, Dp), lambda i, h: (0, 0), pl.Buffered(1)),  # b2 resident
                ],
                out_specs=pl.BlockSpec((TB, Dp), lambda i, h: (i, 0)),
                scratch_shapes=[pltpu.VMEM((TB, Dp), jnp.float32)],
            ),
            compiler_params=pltpu.CompilerParams(
                dimension_semantics=("parallel", "arbitrary"),
                vmem_limit_bytes=vmem_limit,
            ),
            cost_estimate=cost,
        )(xp, w1p, b1p, w2p, b2p)

        if (Bp, Dp) == (B, D):
            return out
        return out[:B, :D]

    return fn


def expert_mlp(x, w1, b1, w2, b2, **kwargs):
    """One-shot convenience wrapper (prefer make_expert_mlp for repeated calls,
    so weight padding/casting is done once)."""
    return make_expert_mlp(w1, b1, w2, b2, **kwargs)(x)


def init_linear_params(key, in_features, out_features, dtype=jnp.float32):
    """PyTorch nn.Linear default init: U(-1/sqrt(fan_in), 1/sqrt(fan_in))."""
    kw, kb = jax.random.split(key)
    bound = 1.0 / (in_features ** 0.5)
    # Stored already transposed: (in_features, out_features) so y = x @ W + b.
    w = jax.random.uniform(kw, (in_features, out_features), dtype,
                           minval=-bound, maxval=bound)
    b = jax.random.uniform(kb, (out_features,), dtype,
                           minval=-bound, maxval=bound)
    return w, b


if __name__ == "__main__":
    key = jax.random.PRNGKey(0)

    # ---- Case 1: the module's small demo shape, forced through the Pallas path.
    input_dim, hidden_dim, batch = 32, 64, 8
    k_x, k_l1, k_l2, k_rest = jax.random.split(key, 4)
    x = jax.random.normal(k_x, (batch, input_dim), jnp.float32)
    w1, b1 = init_linear_params(k_l1, input_dim, hidden_dim)
    w2, b2 = init_linear_params(k_l2, hidden_dim, input_dim)
    ref = jnp.maximum(x @ w1 + b1, 0.0) @ w2 + b2

    mlp_f32 = make_expert_mlp(w1, b1, w2, b2, compute_dtype=jnp.float32,
                              force_pallas=True)
    out_f32 = jax.block_until_ready(mlp_f32(x))
    assert out_f32.shape == (batch, input_dim)
    assert jnp.allclose(out_f32, ref, atol=1e-5, rtol=1e-5), "f32 mismatch vs reference"

    # bf16 MXU inputs, f32 accumulation (recommended perf configuration).
    mlp_bf16 = make_expert_mlp(w1, b1, w2, b2, compute_dtype=jnp.bfloat16,
                               force_pallas=True)
    out_bf16 = jax.block_until_ready(mlp_bf16(x))
    assert jnp.allclose(out_bf16, ref, atol=5e-2, rtol=5e-2), "bf16 mismatch vs reference"

    # Auto shape-gate: tiny experts route to plain XLA and must match too.
    out_xla = jax.block_until_ready(make_expert_mlp(w1, b1, w2, b2)(x))
    assert jnp.allclose(out_xla, ref, atol=1e-5, rtol=1e-5), "XLA fallback mismatch"

    # ---- Case 2: exercise the H-tiled accumulator path and batch tiling.
    D2, H2, B2 = 256, 384, 64
    k_x2, k_l3, k_l4 = jax.random.split(k_rest, 3)
    x2 = jax.random.normal(k_x2, (B2, D2), jnp.float32)
    w1b, b1b = init_linear_params(k_l3, D2, H2)
    w2b, b2b = init_linear_params(k_l4, H2, D2)
    ref2 = jnp.maximum(x2 @ w1b + b1b, 0.0) @ w2b + b2b

    mlp_tiled = make_expert_mlp(w1b, b1b, w2b, b2b, compute_dtype=jnp.float32,
                                block_b=32, block_h=128, force_pallas=True)
    out_tiled = jax.block_until_ready(mlp_tiled(x2))   # grid = (2 batch, 3 hidden)
    assert out_tiled.shape == (B2, D2)
    assert jnp.allclose(out_tiled, ref2, atol=1e-4, rtol=1e-4), "H-tiled mismatch"

    print("KERNEL_OK")
</pallas_src>

<mosaic_0001>
module attributes {stable_mosaic.version = 11 : i64} {
  func.func @expert_mlp_kernel(%arg0: i32, %arg1: i32, %arg2: memref<8x128xf32, #tpu.memory_space<vmem>>, %arg3: memref<128x128xf32, #tpu.memory_space<vmem>>, %arg4: memref<1x128xf32, #tpu.memory_space<vmem>>, %arg5: memref<128x128xf32, #tpu.memory_space<vmem>>, %arg6: memref<1x128xf32, #tpu.memory_space<vmem>>, %arg7: memref<8x128xf32, #tpu.memory_space<vmem>>, %arg8: memref<8x128xf32, #tpu.memory_space<vmem>>) attributes {dimension_semantics = [#tpu.dimension_semantics<parallel>, #tpu.dimension_semantics<arbitrary>], iteration_bounds = array<i64: 1, 1>, scalar_prefetch = 0 : i64, scratch_operands = 1 : i64, tpu.core_type = #tpu.core_type<tc>, window_params = [{transform_indices = @transform_0, window_bounds = array<i64: 8, 128>}, {pipeline_mode = #tpu.pipeline_mode<synchronous>, transform_indices = @transform_1, window_bounds = array<i64: 128, 128>}, {pipeline_mode = #tpu.pipeline_mode<synchronous>, transform_indices = @transform_2, window_bounds = array<i64: 1, 128>}, {pipeline_mode = #tpu.pipeline_mode<synchronous>, transform_indices = @transform_3, window_bounds = array<i64: 128, 128>}, {pipeline_mode = #tpu.pipeline_mode<synchronous>, transform_indices = @transform_4, window_bounds = array<i64: 1, 128>}, {transform_indices = @transform_5, window_bounds = array<i64: 8, 128>}]} {
    %c0_i32 = arith.constant 0 : i32
    %0 = arith.cmpi eq, %arg1, %c0_i32 : i32
    %1 = arith.extui %0 : i1 to i32
    %c0_i32_0 = arith.constant 0 : i32
    %2 = arith.cmpi ne, %1, %c0_i32_0 : i32
    scf.if %2 {
      %cst_16 = arith.constant 0.000000e+00 : f32
      %19 = vector.broadcast %cst_16 : f32 to vector<8x128xf32>
      %c0_17 = arith.constant 0 : index
      %c0_18 = arith.constant 0 : index
      %20 = vector.load %arg8[%c0_17, %c0_18] : memref<8x128xf32, #tpu.memory_space<vmem>>, vector<8x128xf32>
      tpu.vector_store %arg8[%c0_17, %c0_18], %19 {strides = array<i32>} : memref<8x128xf32, #tpu.memory_space<vmem>>, vector<8x128xf32>,
    } else {
    }
    %c0 = arith.constant 0 : index
    %c0_1 = arith.constant 0 : index
    %3 = vector.load %arg2[%c0, %c0_1] : memref<8x128xf32, #tpu.memory_space<vmem>>, vector<8x128xf32>
    %c0_2 = arith.constant 0 : index
    %c0_3 = arith.constant 0 : index
    %4 = vector.load %arg3[%c0_2, %c0_3] : memref<128x128xf32, #tpu.memory_space<vmem>>, vector<128x128xf32>
    %cst = arith.constant dense<0.000000e+00> : vector<8x128xf32>
    %5 = tpu.matmul %3, %4, %cst {dimension_numbers = #tpu.dot_dimension_numbers<[1], [0], [0], [1], [0, 0, 1, 1], [], []>} : vector<8x128xf32>, vector<128x128xf32>, vector<8x128xf32> -> vector<8x128xf32>
    %c0_4 = arith.constant 0 : index
    %c0_5 = arith.constant 0 : index
    %6 = vector.load %arg4[%c0_4, %c0_5] : memref<1x128xf32, #tpu.memory_space<vmem>>, vector<1x128xf32>
    %7 = vector.broadcast %6 : vector<1x128xf32> to vector<8x128xf32>
    %8 = arith.addf %5, %7 : vector<8x128xf32>
    %cst_6 = arith.constant 0.000000e+00 : f32
    %9 = vector.broadcast %cst_6 : f32 to vector<8x128xf32>
    %10 = arith.maximumf %8, %9 : vector<8x128xf32>
    %c0_7 = arith.constant 0 : index
    %c0_8 = arith.constant 0 : index
    %11 = vector.load %arg8[%c0_7, %c0_8] : memref<8x128xf32, #tpu.memory_space<vmem>>, vector<8x128xf32>
    %c0_9 = arith.constant 0 : index
    %c0_10 = arith.constant 0 : index
    %12 = vector.load %arg5[%c0_9, %c0_10] : memref<128x128xf32, #tpu.memory_space<vmem>>, vector<128x128xf32>
    %cst_11 = arith.constant dense<0.000000e+00> : vector<8x128xf32>
    %13 = tpu.matmul %10, %12, %cst_11 {dimension_numbers = #tpu.dot_dimension_numbers<[1], [0], [0], [1], [0, 0, 1, 1], [], []>} : vector<8x128xf32>, vector<128x128xf32>, vector<8x128xf32> -> vector<8x128xf32>
    %14 = arith.addf %11, %13 : vector<8x128xf32>
    %c0_12 = arith.constant 0 : index
    %c0_13 = arith.constant 0 : index
    %15 = vector.load %arg8[%c0_12, %c0_13] : memref<8x128xf32, #tpu.memory_space<vmem>>, vector<8x128xf32>
    tpu.vector_store %arg8[%c0_12, %c0_13], %14 {strides = array<i32>} : memref<8x128xf32, #tpu.memory_space<vmem>>, vector<8x128xf32>,
    %c0_i32_14 = arith.constant 0 : i32
    %16 = arith.cmpi eq, %arg1, %c0_i32_14 : i32
    %17 = arith.extui %16 : i1 to i32
    %c0_i32_15 = arith.constant 0 : i32
    %18 = arith.cmpi ne, %17, %c0_i32_15 : i32
    scf.if %18 {
      %c0_16 = arith.constant 0 : index
      %c0_17 = arith.constant 0 : index
      %19 = vector.load %arg8[%c0_16, %c0_17] : memref<8x128xf32, #tpu.memory_space<vmem>>, vector<8x128xf32>
      %c0_18 = arith.constant 0 : index
      %c0_19 = arith.constant 0 : index
      %20 = vector.load %arg6[%c0_18, %c0_19] : memref<1x128xf32, #tpu.memory_space<vmem>>, vector<1x128xf32>
      %21 = vector.broadcast %20 : vector<1x128xf32> to vector<8x128xf32>
      %22 = arith.addf %19, %21 : vector<8x128xf32>
      %c0_20 = arith.constant 0 : index
      %c0_21 = arith.constant 0 : index
      %23 = vector.load %arg7[%c0_20, %c0_21] : memref<8x128xf32, #tpu.memory_space<vmem>>, vector<8x128xf32>
      tpu.vector_store %arg7[%c0_20, %c0_21], %22 {strides = array<i32>} : memref<8x128xf32, #tpu.memory_space<vmem>>, vector<8x128xf32>,
    } else {
    }
    return
  }
  func.func @transform_0(%arg0: i32, %arg1: i32) -> (i32, i32) {
    %c0_i32 = arith.constant 0 : i32
    %c0_i32_0 = arith.constant 0 : i32
    return %arg0, %c0_i32 : i32, i32
  }
  func.func @transform_1(%arg0: i32, %arg1: i32) -> (i32, i32) {
    %c0_i32 = arith.constant 0 : i32
    %c0_i32_0 = arith.constant 0 : i32
    return %c0_i32, %arg1 : i32, i32
  }
  func.func @transform_2(%arg0: i32, %arg1: i32) -> (i32, i32) {
    %c0_i32 = arith.constant 0 : i32
    %c0_i32_0 = arith.constant 0 : i32
    return %c0_i32, %arg1 : i32, i32
  }
  func.func @transform_3(%arg0: i32, %arg1: i32) -> (i32, i32) {
    %c0_i32 = arith.constant 0 : i32
    %c0_i32_0 = arith.constant 0 : i32
    return %arg1, %c0_i32 : i32, i32
  }
  func.func @transform_4(%arg0: i32, %arg1: i32) -> (i32, i32) {
    %c0_i32 = arith.constant 0 : i32
    %c0_i32_0 = arith.constant 0 : i32
    %c0_i32_1 = arith.constant 0 : i32
    return %c0_i32, %c0_i32_0 : i32, i32
  }
  func.func @transform_5(%arg0: i32, %arg1: i32) -> (i32, i32) {
    %c0_i32 = arith.constant 0 : i32
    %c0_i32_0 = arith.constant 0 : i32
    return %arg0, %c0_i32 : i32, i32
  }
}

</mosaic_0001>

<llo_original>
// kernel: tpu_custom_call.1
$region0: #{tpu_custom_call.1}
  #allocation0 [shape = 'u32[]', space=smem, size = 0x4, offset = 0x4, fixed_abs, tag = 'smem constant byte address 0x4 - core index']
  #allocation1 [shape = 'u32[72,128]{1,0:T(1,128)}', space=vmem, size = 0x9000, scoped, tag = 'internal scratch']
  #allocation2 [shape = 'f32[8,128]{1,0:T(8,128)}', space=vmem, size = 0x1000, scoped, tag = 'scratch operand']
  %s0 = inlined_call_operand.hbm [shape: f32[8,128], index: 0, kind: input, shape index: {}]
  %s1 = inlined_call_operand.hbm [shape: f32[128,128], index: 1, kind: input, shape index: {}]
  %s2 = inlined_call_operand.vmem [shape: f32[1,128], index: 2, kind: input, shape index: {}]
  %s3 = inlined_call_operand.hbm [shape: f32[128,128], index: 3, kind: input, shape index: {}]
  %s4 = inlined_call_operand.vmem [shape: f32[1,128], index: 4, kind: input, shape index: {}]
  %s5 = inlined_call_operand.hbm [shape: f32[8,128], index: 5, kind: output, shape index: {}]
  %s6 = sld [smem:[#allocation0]]
  $region50: #{tpu_custom_call.1} parent=0
    _
  %s8 = ssub.s32 1, %s6
  %s9 = scalar_select 0, %s8, %s6
  $region1: #{tpu_custom_call.1} parent=0
    #allocation3 [shape = 'u8[4096]{0}', space=vmem, size = 0x1000, scoped, tag = 'input window, operand 0, single buffered']
    #allocation4 [shape = 's32[1]{0}', space=sflag, size = 0x4, scoped, tag = 'scoped memory for tpu_custom_call.1']
    #allocation5 [shape = 's32[1]{0}', space=sflag, size = 0x4, scoped, tag = 'scoped memory for tpu_custom_call.1']
    #allocation6 [shape = 'u8[65536]{0}', space=vmem, size = 0x10000, scoped, tag = 'input window, operand 1, single buffered']
    #allocation7 [shape = 's32[1]{0}', space=sflag, size = 0x4, scoped, tag = 'scoped memory for tpu_custom_call.1']
    #allocation8 [shape = 'u8[65536]{0}', space=vmem, size = 0x10000, scoped, tag = 'input window, operand 3, single buffered']
    #allocation9 [shape = 'u8[4096]{0}', space=vmem, size = 0x1000, scoped, tag = 'output window, operand 0, single buffered']
    %10 = vsyncpa [#allocation4], 0
    %11 = vsyncpa [#allocation7], 0
    %12 = vsyncpa [#allocation5], 0
    // Predicated region
    $region2: #{tpu_custom_call.1} parent=1 // pred_check
      _
    $region3: #{tpu_custom_call.1} parent=1 // pred_check_branch
      %14 = sbr.rel (0) target = $region5
    $region4: #{tpu_custom_call.1} parent=1 // pred_region
      %16 = vsyncadd [#allocation4], 0
      %s18 = sshll.u32 %s0, 4
      %s19 = int_to_ptr.hbm [resolvable:$true] %s18
      %s20 = sshll.u32 [#allocation3], 4
      %s21 = int_to_ptr.vmem [resolvable:$true] %s20
      %23 = dma.hbm_to_vmem [thread:$0]  %s19, 128, %s21, [#allocation4]
    $region5: #{tpu_custom_call.1} parent=1 // pred_fallthru
      _
    // Predicated region
    $region6: #{tpu_custom_call.1} parent=1 // pred_check
      _
    $region7: #{tpu_custom_call.1} parent=1 // pred_check_branch
      %25 = sbr.rel (0) target = $region9
    $region8: #{tpu_custom_call.1} parent=1 // pred_region
      %27 = vsyncadd [#allocation7], 0
      %s28 = sshll.u32 %s1, 4
      %s29 = int_to_ptr.hbm [resolvable:$true] %s28
      %s30 = sshll.u32 [#allocation6], 4
      %s31 = int_to_ptr.vmem [resolvable:$true] %s30
      %36 = dma.hbm_to_vmem [thread:$0]  %s29, 2048, %s31, [#allocation7], 128, 128, 8
    $region9: #{tpu_custom_call.1} parent=1 // pred_fallthru
      _
    // Predicated region
    $region10: #{tpu_custom_call.1} parent=1 // pred_check
      _
    $region11: #{tpu_custom_call.1} parent=1 // pred_check_branch
      %38 = sbr.rel (0) target = $region13
    $region12: #{tpu_custom_call.1} parent=1 // pred_region
      _
    $region13: #{tpu_custom_call.1} parent=1 // pred_fallthru
      _
    // Predicated region
    $region14: #{tpu_custom_call.1} parent=1 // pred_check
      _
    $region15: #{tpu_custom_call.1} parent=1 // pred_check_branch
      %40 = sbr.rel (0) target = $region17
    $region16: #{tpu_custom_call.1} parent=1 // pred_region
      %42 = vsyncadd [#allocation7], 0
      %s43 = sshll.u32 %s3, 4
      %s44 = int_to_ptr.hbm [resolvable:$true] %s43
      %s45 = sshll.u32 [#allocation8], 4
      %s46 = int_to_ptr.vmem [resolvable:$true] %s45
      %51 = dma.hbm_to_vmem [thread:$0]  %s44, 2048, %s46, [#allocation7], 128, 128, 8
    $region17: #{tpu_custom_call.1} parent=1 // pred_fallthru
      _
    // Predicated region
    $region18: #{tpu_custom_call.1} parent=1 // pred_check
      _
    $region19: #{tpu_custom_call.1} parent=1 // pred_check_branch
      %53 = sbr.rel (0) target = $region21
    $region20: #{tpu_custom_call.1} parent=1 // pred_region
      _
    $region21: #{tpu_custom_call.1} parent=1 // pred_fallthru
      _
    // Predicated region
    $region22: #{tpu_custom_call.1} parent=1 // pred_check
      _
    $region23: #{tpu_custom_call.1} parent=1 // pred_check_branch
      %55 = sbr.rel (0) target = $region25
    $region24: #{tpu_custom_call.1} parent=1 // pred_region
      %57 = dma.done [#allocation4], 128
    $region25: #{tpu_custom_call.1} parent=1 // pred_fallthru
      _
    // Predicated region
    $region26: #{tpu_custom_call.1} parent=1 // pred_check
      _
    $region27: #{tpu_custom_call.1} parent=1 // pred_check_branch
      %59 = sbr.rel (0) target = $region29
    $region28: #{tpu_custom_call.1} parent=1 // pred_region
      %61 = dma.done [#allocation7], 2048
    $region29: #{tpu_custom_call.1} parent=1 // pred_fallthru
      _
    // Predicated region
    $region30: #{tpu_custom_call.1} parent=1 // pred_check
      _
    $region31: #{tpu_custom_call.1} parent=1 // pred_check_branch
      %63 = sbr.rel (0) target = $region33
    $region32: #{tpu_custom_call.1} parent=1 // pred_region
      %65 = dma.done [#allocation7], 2048
    $region33: #{tpu_custom_call.1} parent=1 // pred_fallthru
      _
    %p66 = scmp.eq.s32.totalorder 0, 0
    // Predicated region
    $region34: #{tpu_custom_call.1} parent=1 // pred_check
      %p67 = pneg %p66
    $region35: #{tpu_custom_call.1} parent=1 // pred_check_branch
      %69 = sbr.rel (%p67) target = $region37
    $region36: #{tpu_custom_call.1} parent=1 // pred_region
      %70 = vst [vmem:[#allocation2] sm:$0xff] 0.0
    $region37: #{tpu_custom_call.1} parent=1 // pred_fallthru
      _
    %v71 = vld [vmem:[#allocation3] sm:$0xff]
    %v72 = vld [vmem:[#allocation6] sm:$0xff]
    %v73 = vld [vmem:[#allocation6 + $0x8] sm:$0xff]
    %v74 = vld [vmem:[#allocation6 + $0x10] sm:$0xff]
    %v75 = vld [vmem:[#allocation6 + $0x18] sm:$0xff]
    %v76 = vld [vmem:[#allocation6 + $0x20] sm:$0xff]
    %v77 = vld [vmem:[#allocation6 + $0x28] sm:$0xff]
    %v78 = vld [vmem:[#allocation6 + $0x30] sm:$0xff]
    %v79 = vld [vmem:[#allocation6 + $0x38] sm:$0xff]
    %v80 = vld [vmem:[#allocation6 + $0x40] sm:$0xff]
    %v81 = vld [vmem:[#allocation6 + $0x48] sm:$0xff]
    %v82 = vld [vmem:[#allocation6 + $0x50] sm:$0xff]
    %v83 = vld [vmem:[#allocation6 + $0x58] sm:$0xff]
    %v84 = vld [vmem:[#allocation6 + $0x60] sm:$0xff]
    %v85 = vld [vmem:[#allocation6 + $0x68] sm:$0xff]
    %v86 = vld [vmem:[#allocation6 + $0x70] sm:$0xff]
    %v87 = vld [vmem:[#allocation6 + $0x78] sm:$0xff]
    %v88 = vld [vmem:[%s2] sm:$0x1]
    %v90 = vperm.slane %v88, 0
    %92 = vmatpush.msra.mxu0 %v87
    %93 = vmatpush.msra.mxu0 %v86
    %94 = vmatpush.msra.mxu0 %v85
    %95 = vmatpush.msra.mxu0 %v84
    %96 = vmatpush.msra.mxu0 %v83
    %97 = vmatpush.msra.mxu0 %v82
    %98 = vmatpush.msra.mxu0 %v81
    %99 = vmatpush.msra.mxu0 %v80
    %100 = vmatpush.msra.mxu0 %v79
    %101 = vmatpush.msra.mxu0 %v78
    %102 = vmatpush.msra.mxu0 %v77
    %103 = vmatpush.msra.mxu0 %v76
    %104 = vmatpush.msra.mxu0 %v75
    %105 = vmatpush.msra.mxu0 %v74
    %106 = vmatpush.msra.mxu0 %v73
    %107 = vmatpush.msra.mxu0 %v72
    %108 = vmatmul.f32.gmra.mxu0 %v71
    %v109 = vpop.f32.mrf.mxu0
    %v110 = vadd.f32 %v90, %v109
    %111 = vdwg.mxu0
    %v112 = vmax.f32 %v110, 0.0
    %v113 = vld [vmem:[#allocation2] sm:$0xff]
    %v114 = vld [vmem:[#allocation8] sm:$0xff]
    %v115 = vld [vmem:[#allocation8 + $0x8] sm:$0xff]
    %v116 = vld [vmem:[#allocation8 + $0x10] sm:$0xff]
    %v117 = vld [vmem:[#allocation8 + $0x18] sm:$0xff]
    %v118 = vld [vmem:[#allocation8 + $0x20] sm:$0xff]
    %v119 = vld [vmem:[#allocation8 + $0x28] sm:$0xff]
    %v120 = vld [vmem:[#allocation8 + $0x30] sm:$0xff]
    %v121 = vld [vmem:[#allocation8 + $0x38] sm:$0xff]
    %v122 = vld [vmem:[#allocation8 + $0x40] sm:$0xff]
    %v123 = vld [vmem:[#allocation8 + $0x48] sm:$0xff]
    %v124 = vld [vmem:[#allocation8 + $0x50] sm:$0xff]
    %v125 = vld [vmem:[#allocation8 + $0x58] sm:$0xff]
    %v126 = vld [vmem:[#allocation8 + $0x60] sm:$0xff]
    %v127 = vld [vmem:[#allocation8 + $0x68] sm:$0xff]
    %v128 = vld [vmem:[#allocation8 + $0x70] sm:$0xff]
    %v129 = vld [vmem:[#allocation8 + $0x78] sm:$0xff]
    %130 = vmatpush.msra.mxu0 %v129
    %131 = vmatpush.msra.mxu0 %v128
    %132 = vmatpush.msra.mxu0 %v127
    %133 = vmatpush.msra.mxu0 %v126
    %134 = vmatpush.msra.mxu0 %v125
    %135 = vmatpush.msra.mxu0 %v124
    %136 = vmatpush.msra.mxu0 %v123
    %137 = vmatpush.msra.mxu0 %v122
    %138 = vmatpush.msra.mxu0 %v121
    %139 = vmatpush.msra.mxu0 %v120
    %140 = vmatpush.msra.mxu0 %v119
    %141 = vmatpush.msra.mxu0 %v118
    %142 = vmatpush.msra.mxu0 %v117
    %143 = vmatpush.msra.mxu0 %v116
    %144 = vmatpush.msra.mxu0 %v115
    %145 = vmatpush.msra.mxu0 %v114
    %146 = vmatmul.f32.gmra.mxu0 %v112
    %v147 = vpop.f32.mrf.mxu0
    %v148 = vadd.f32 0.0, %v147
    %149 = vdwg.mxu0
    %v150 = vadd.f32 %v113, %v148
    %151 = vst [vmem:[#allocation2] sm:$0xff] %v150
    // Predicated region
    $region38: #{tpu_custom_call.1} parent=1 // pred_check
      %p152 = pneg %p66
    $region39: #{tpu_custom_call.1} parent=1 // pred_check_branch
      %154 = sbr.rel (%p152) target = $region41
    $region40: #{tpu_custom_call.1} parent=1 // pred_region
      %v155 = vld [vmem:[#allocation2] sm:$0xff]
      %v156 = vld [vmem:[%s4] sm:$0x1]
      %v158 = vperm.slane %v156, 0
      %v160 = vadd.f32 %v155, %v158
      %161 = vst [vmem:[#allocation9] sm:$0xff] %v160
    $region41: #{tpu_custom_call.1} parent=1 // pred_fallthru
      _
    // Predicated region
    $region42: #{tpu_custom_call.1} parent=1 // pred_check
      _
    $region43: #{tpu_custom_call.1} parent=1 // pred_check_branch
      %163 = sbr.rel (0) target = $region45
    $region44: #{tpu_custom_call.1} parent=1 // pred_region
      %165 = vsyncadd [#allocation5], 0
      %s167 = sshll.u32 [#allocation9], 4
      %s168 = int_to_ptr.vmem [resolvable:$true] %s167
      %s169 = sshll.u32 %s5, 4
      %s170 = int_to_ptr.hbm [resolvable:$true] %s169
      %172 = dma.vmem_to_hbm [thread:$0]  %s168, 128, %s170, [#allocation5]
    $region45: #{tpu_custom_call.1} parent=1 // pred_fallthru
      _
    // Predicated region
    $region46: #{tpu_custom_call.1} parent=1 // pred_check
      _
    $region47: #{tpu_custom_call.1} parent=1 // pred_check_branch
      %174 = sbr.rel (0) target = $region49
    $region48: #{tpu_custom_call.1} parent=1 // pred_region
      %176 = dma.done [#allocation5], 128
    $region49: #{tpu_custom_call.1} parent=1 // pred_fallthru
      _
    %177 = vsyncpa [#allocation4], 1
    %178 = vsyncpa [#allocation7], 1
    %179 = vsyncpa [#allocation5], 1

</llo_original>
